<compile_context>
chip_gen: v6e
topology: v6e:2x2x1
jax: 0.10.0
libtpu: 0.0.40
codegen_flags: <defaults>
</compile_context>

<pallas_src>
import functools

import jax
import jax.numpy as jnp
from jax import lax
from jax.experimental import pallas as pl
from jax.experimental.pallas import tpu as pltpu

LANE = 128
SUBLANE = 8
TARGET_BLOCK_ROWS = 1024  # (1024,128) f32 = 512 KiB/block; 2 inputs x 2 bufs ≈ 2 MiB VMEM


def _bce_partial_kernel(x_ref, t_ref, out_ref, *, n_valid, block_rows, blocks_per_core):
    c = pl.program_id(0)  # chunk / core axis ("parallel")
    i = pl.program_id(1)  # reduction axis   ("arbitrary")

    @pl.when(i == 0)
    def _():
        out_ref[...] = jnp.zeros_like(out_ref)

    # Logical block index. It may exceed the number of real blocks on the last
    # (possibly shorter) chunk; the index_map clamps the DMA window and the
    # mask below zeroes every element whose flat index is >= n_valid.
    blk = c * blocks_per_core + i
    row0 = blk * block_rows

    x = x_ref[...].astype(jnp.float32)
    t = t_ref[...].astype(jnp.float32)

    # Numerically-stable BCE with logits (same formula PyTorch uses):
    #   loss = max(x, 0) - x*t + log(1 + exp(-|x|))
    bce = jnp.maximum(x, 0.0) - x * t + jnp.log1p(jnp.exp(-jnp.abs(x)))

    # In-kernel validity mask (no mask stream from HBM). where() selects 0 for
    # invalid slots, so garbage / NaN in padded or out-of-range data is inert.
    rows_iota = lax.broadcasted_iota(jnp.int32, (block_rows, LANE), 0) + row0
    cols_iota = lax.broadcasted_iota(jnp.int32, (block_rows, LANE), 1)
    flat_idx = rows_iota * LANE + cols_iota
    bce = jnp.where(flat_idx < n_valid, bce, 0.0)

    # Lane-shaped accumulation into the VMEM-resident output block.
    out_ref[0:1, :] += jnp.sum(bce, axis=0, keepdims=True)


def focal_loss_kaggle(inputs, targets, alpha=1.0, gamma=2.0, reduce=True):
    """Pallas TPU focal loss (Kaggle variant). Returns a float32 scalar."""
    assert inputs.shape == targets.shape
    n_valid = int(inputs.size)

    # Flatten to a lane-dense 2-D slab in the ORIGINAL dtype (cast happens
    # inside the kernel). Only a tiny (<128 element) zero pad is added when
    # numel is not a multiple of 128; it is masked in-kernel.
    x_flat = inputs.reshape(-1)
    t_flat = targets.reshape(-1)
    pad = (-n_valid) % LANE
    if pad:
        x_flat = jnp.pad(x_flat, (0, pad))
        t_flat = jnp.pad(t_flat, (0, pad))

    rows = (n_valid + pad) // LANE
    x2 = x_flat.reshape(rows, LANE)
    t2 = t_flat.reshape(rows, LANE)

    # Block / grid sizing.
    block_rows = rows if rows <= TARGET_BLOCK_ROWS else TARGET_BLOCK_ROWS
    num_blocks = pl.cdiv(rows, block_rows)
    # Two chunks so v7x's two TensorCores can each take half the reduction;
    # harmless (serial) on single-TC chips.
    num_chunks = 2 if num_blocks >= 2 else 1
    blocks_per_core = pl.cdiv(num_blocks, num_chunks)

    def in_index_map(c, i):
        # Clamp so the DMA window of any wasted trailing step stays in bounds;
        # those steps are fully masked inside the kernel.
        return (jnp.minimum(c * blocks_per_core + i, num_blocks - 1), 0)

    in_spec = pl.BlockSpec((block_rows, LANE), in_index_map)
    out_spec = pl.BlockSpec((SUBLANE, LANE), lambda c, i: (c, 0))

    kernel = functools.partial(
        _bce_partial_kernel,
        n_valid=n_valid,
        block_rows=block_rows,
        blocks_per_core=blocks_per_core,
    )

    partials = pl.pallas_call(
        kernel,
        out_shape=jax.ShapeDtypeStruct((num_chunks * SUBLANE, LANE), jnp.float32),
        grid_spec=pltpu.PrefetchScalarGridSpec(
            num_scalar_prefetch=0,
            grid=(num_chunks, blocks_per_core),
            in_specs=[in_spec, in_spec],
            out_specs=out_spec,
        ),
        compiler_params=pltpu.CompilerParams(
            dimension_semantics=("parallel", "arbitrary"),
        ),
    )(x2, t2)

    # Scalar epilogue (a handful of flops). Done in plain JAX so the per-core
    # partial sums can be combined, as suggested by the perf review.
    bce_mean = jnp.sum(partials) / jnp.float32(n_valid)
    pt = jnp.exp(-bce_mean)
    one_minus_pt = jnp.maximum(1.0 - pt, 0.0)  # guard against pt > 1 round-off
    g = float(gamma)
    if g.is_integer():
        focal_w = lax.integer_pow(one_minus_pt, int(g))
    else:
        focal_w = one_minus_pt ** g
    loss = jnp.float32(alpha) * focal_w * bce_mean
    # reduce=True -> mean of a scalar is the same scalar (matches PyTorch).
    return loss


def _focal_loss_ref(inputs, targets, alpha=1.0, gamma=2.0):
    x = inputs.astype(jnp.float32)
    t = targets.astype(jnp.float32)
    bce = jnp.maximum(x, 0.0) - x * t + jnp.log1p(jnp.exp(-jnp.abs(x)))
    bce_mean = jnp.mean(bce)
    pt = jnp.exp(-bce_mean)
    return alpha * (1.0 - pt) ** gamma * bce_mean


def _check(shape, key, rtol):
    k1, k2 = jax.random.split(key)
    x = jax.random.normal(k1, shape, dtype=jnp.float32)
    t = (jax.random.uniform(k2, shape) > 0.5).astype(jnp.float32)
    loss = jax.block_until_ready(focal_loss_kaggle(x, t, alpha=1.0, gamma=2.0))
    ref = _focal_loss_ref(x, t, alpha=1.0, gamma=2.0)
    assert jnp.allclose(loss, ref, rtol=rtol, atol=1e-6), (shape, loss, ref)


if __name__ == "__main__":
    key = jax.random.PRNGKey(0)
    keys = jax.random.split(key, 3)

    # Primary case: NCHW logits / {0,1} targets as BCEWithLogitsLoss expects.
    _check((2, 4, 16, 16), keys[0], rtol=1e-5)
    # Ragged element count (not a multiple of 128) -> exercises pad + mask path.
    _check((3, 5, 7, 11), keys[1], rtol=1e-4)
    # Multi-block, multi-chunk, ragged last block -> exercises the parallel
    # chunk split, the in-chunk accumulation and the clamped out-of-range step.
    _check((5, 4, 128, 128), keys[2], rtol=1e-4)

    print("KERNEL_OK")
</pallas_src>

<mosaic_0001>
module attributes {stable_mosaic.version = 11 : i64} {
  func.func @_bce_partial_kernel(%arg0: i32, %arg1: i32, %arg2: memref<16x128xf32, #tpu.memory_space<vmem>>, %arg3: memref<16x128xf32, #tpu.memory_space<vmem>>, %arg4: memref<8x128xf32, #tpu.memory_space<vmem>>) attributes {dimension_semantics = [#tpu.dimension_semantics<parallel>, #tpu.dimension_semantics<arbitrary>], iteration_bounds = array<i64: 1, 1>, scalar_prefetch = 0 : i64, scratch_operands = 0 : i64, tpu.core_type = #tpu.core_type<tc>, window_params = [{transform_indices = @transform_0, window_bounds = array<i64: 16, 128>}, {transform_indices = @transform_1, window_bounds = array<i64: 16, 128>}, {transform_indices = @transform_2, window_bounds = array<i64: 8, 128>}]} {
    %c0_i32 = arith.constant 0 : i32
    %0 = arith.cmpi eq, %arg1, %c0_i32 : i32
    %1 = arith.extui %0 : i1 to i32
    %c0_i32_0 = arith.constant 0 : i32
    %2 = arith.cmpi ne, %1, %c0_i32_0 : i32
    scf.if %2 {
      %cst_11 = arith.constant 0.000000e+00 : f32
      %34 = vector.broadcast %cst_11 : f32 to vector<8x128xf32>
      %c0_12 = arith.constant 0 : index
      %c0_13 = arith.constant 0 : index
      %35 = vector.load %arg4[%c0_12, %c0_13] : memref<8x128xf32, #tpu.memory_space<vmem>>, vector<8x128xf32>
      tpu.vector_store %arg4[%c0_12, %c0_13], %34 {strides = array<i32>} : memref<8x128xf32, #tpu.memory_space<vmem>>, vector<8x128xf32>,
    } else {
    }
    %c1_i32 = arith.constant 1 : i32
    %3 = arith.muli %arg0, %c1_i32 : i32
    %4 = arith.addi %3, %arg1 : i32
    %c16_i32 = arith.constant 16 : i32
    %5 = arith.muli %4, %c16_i32 : i32
    %c0 = arith.constant 0 : index
    %c0_1 = arith.constant 0 : index
    %6 = vector.load %arg2[%c0, %c0_1] : memref<16x128xf32, #tpu.memory_space<vmem>>, vector<16x128xf32>
    %c0_2 = arith.constant 0 : index
    %c0_3 = arith.constant 0 : index
    %7 = vector.load %arg3[%c0_2, %c0_3] : memref<16x128xf32, #tpu.memory_space<vmem>>, vector<16x128xf32>
    %cst = arith.constant 0.000000e+00 : f32
    %8 = vector.broadcast %cst : f32 to vector<16x128xf32>
    %9 = arith.maximumf %6, %8 : vector<16x128xf32>
    %10 = arith.mulf %6, %7 : vector<16x128xf32>
    %11 = arith.subf %9, %10 : vector<16x128xf32>
    %12 = math.absf %6 : vector<16x128xf32>
    %cst_4 = arith.constant 0.000000e+00 : f32
    %13 = vector.broadcast %cst_4 : f32 to vector<16x128xf32>
    %14 = arith.subf %13, %12 : vector<16x128xf32>
    %15 = math.exp %14 : vector<16x128xf32>
    %16 = math.log1p %15 : vector<16x128xf32>
    %17 = arith.addf %11, %16 : vector<16x128xf32>
    %18 = tpu.iota {dimensions = array<i32: 0>} : vector<16x128xi32>
    %19 = vector.broadcast %5 : i32 to vector<16x128xi32>
    %20 = arith.addi %18, %19 : vector<16x128xi32>
    %21 = tpu.iota {dimensions = array<i32: 1>} : vector<16x128xi32>
    %c128_i32 = arith.constant 128 : i32
    %22 = vector.broadcast %c128_i32 : i32 to vector<16x128xi32>
    %23 = arith.muli %20, %22 : vector<16x128xi32>
    %24 = arith.addi %23, %21 : vector<16x128xi32>
    %c2048_i32 = arith.constant 2048 : i32
    %25 = vector.broadcast %c2048_i32 : i32 to vector<16x128xi32>
    %26 = arith.cmpi slt, %24, %25 : vector<16x128xi32>
    %cst_5 = arith.constant 0.000000e+00 : f32
    %27 = vector.broadcast %cst_5 : f32 to vector<16x128xf32>
    %28 = arith.select %26, %17, %27 : vector<16x128xi1>, vector<16x128xf32>
    %c0_6 = arith.constant 0 : index
    %c0_7 = arith.constant 0 : index
    %29 = vector.load %arg4[%c0_6, %c0_7] : memref<8x128xf32, #tpu.memory_space<vmem>>, vector<1x128xf32>
    %cst_8 = arith.constant dense<0.000000e+00> : vector<128xf32>
    %30 = vector.multi_reduction <add>, %28, %cst_8 [0] : vector<16x128xf32> to vector<128xf32>
    %31 = vector.shape_cast %30 : vector<128xf32> to vector<1x128xf32>
    %32 = arith.addf %29, %31 : vector<1x128xf32>
    %c0_9 = arith.constant 0 : index
    %c0_10 = arith.constant 0 : index
    %33 = vector.load %arg4[%c0_9, %c0_10] : memref<8x128xf32, #tpu.memory_space<vmem>>, vector<1x128xf32>
    tpu.vector_store %arg4[%c0_9, %c0_10], %32 {strides = array<i32>} : memref<8x128xf32, #tpu.memory_space<vmem>>, vector<1x128xf32>,
    return
  }
  func.func @transform_0(%arg0: i32, %arg1: i32) -> (i32, i32) {
    %c1_i32 = arith.constant 1 : i32
    %0 = arith.muli %arg0, %c1_i32 : i32
    %1 = arith.addi %0, %arg1 : i32
    %c0_i32 = arith.constant 0 : i32
    %2 = arith.minsi %1, %c0_i32 : i32
    %c0_i32_0 = arith.constant 0 : i32
    %c0_i32_1 = arith.constant 0 : i32
    return %2, %c0_i32_0 : i32, i32
  }
  func.func @transform_1(%arg0: i32, %arg1: i32) -> (i32, i32) {
    %c1_i32 = arith.constant 1 : i32
    %0 = arith.muli %arg0, %c1_i32 : i32
    %1 = arith.addi %0, %arg1 : i32
    %c0_i32 = arith.constant 0 : i32
    %2 = arith.minsi %1, %c0_i32 : i32
    %c0_i32_0 = arith.constant 0 : i32
    %c0_i32_1 = arith.constant 0 : i32
    return %2, %c0_i32_0 : i32, i32
  }
  func.func @transform_2(%arg0: i32, %arg1: i32) -> (i32, i32) {
    %c0_i32 = arith.constant 0 : i32
    %c0_i32_0 = arith.constant 0 : i32
    return %arg0, %c0_i32 : i32, i32
  }
}

</mosaic_0001>

<llo_original>
// kernel: tpu_custom_call.1
$region0: #{tpu_custom_call.1}
  #allocation0 [shape = 'u32[]', space=smem, size = 0x4, offset = 0x4, fixed_abs, tag = 'smem constant byte address 0x4 - core index']
  #allocation1 [shape = 'u32[144,128]{1,0:T(1,128)}', space=vmem, size = 0x12000, scoped, tag = 'internal scratch']
  %s0 = inlined_call_operand.hbm [shape: f32[16,128], index: 0, kind: input, shape index: {}]
  %s1 = inlined_call_operand.hbm [shape: f32[16,128], index: 1, kind: input, shape index: {}]
  %s2 = inlined_call_operand.hbm [shape: f32[8,128], index: 2, kind: output, shape index: {}]
  %s3 = sld [smem:[#allocation0]]
  $region30: #{tpu_custom_call.1} parent=0
    _
  %s5 = ssub.s32 1, %s3
  %s6 = scalar_select 0, %s5, %s3
  $region1: #{tpu_custom_call.1} parent=0
    #allocation2 [shape = 'u8[8192]{0}', space=vmem, size = 0x2000, scoped, tag = 'input window, operand 0, single buffered']
    #allocation3 [shape = 's32[1]{0}', space=sflag, size = 0x4, scoped, tag = 'scoped memory for tpu_custom_call.1']
    #allocation4 [shape = 's32[1]{0}', space=sflag, size = 0x4, scoped, tag = 'scoped memory for tpu_custom_call.1']
    #allocation5 [shape = 'u8[8192]{0}', space=vmem, size = 0x2000, scoped, tag = 'input window, operand 1, single buffered']
    #allocation6 [shape = 's32[1]{0}', space=sflag, size = 0x4, scoped, tag = 'scoped memory for tpu_custom_call.1']
    #allocation7 [shape = 'u8[4096]{0}', space=vmem, size = 0x1000, scoped, tag = 'output window, operand 0, single buffered']
    %7 = vsyncpa [#allocation3], 0
    %8 = vsyncpa [#allocation6], 0
    %9 = vsyncpa [#allocation4], 0
    // Predicated region
    $region2: #{tpu_custom_call.1} parent=1 // pred_check
      _
    $region3: #{tpu_custom_call.1} parent=1 // pred_check_branch
      %11 = sbr.rel (0) target = $region5
    $region4: #{tpu_custom_call.1} parent=1 // pred_region
      %s12 = sadd.s32 0, 0
      %p13 = scmp.lt.s32.totalorder %s12, 0
      %s14 = scalar_select %p13, %s12, 0
      %s15 = smul.u32 2, %s14
      %s17 = ssub.s32 256, 256
      %18 = vsyncadd [#allocation3], %s17
      %s19 = smul.addr %s15, 128
      %s20 = scalar_lea.hbm %s0, %s19
      %s21 = sshll.u32 [#allocation2], 4
      %s22 = int_to_ptr.vmem [resolvable:$true] %s21
      %27 = dma.hbm_to_vmem [thread:$0]  %s20, 256, %s22, [#allocation3], 128, 128, 8
    $region5: #{tpu_custom_call.1} parent=1 // pred_fallthru
      _
    // Predicated region
    $region6: #{tpu_custom_call.1} parent=1 // pred_check
      _
    $region7: #{tpu_custom_call.1} parent=1 // pred_check_branch
      %29 = sbr.rel (0) target = $region9
    $region8: #{tpu_custom_call.1} parent=1 // pred_region
      %s30 = sadd.s32 0, 0
      %p31 = scmp.lt.s32.totalorder %s30, 0
      %s32 = scalar_select %p31, %s30, 0
      %s33 = smul.u32 2, %s32
      %s35 = ssub.s32 256, 256
      %36 = vsyncadd [#allocation6], %s35
      %s37 = smul.addr %s33, 128
      %s38 = scalar_lea.hbm %s1, %s37
      %s39 = sshll.u32 [#allocation5], 4
      %s40 = int_to_ptr.vmem [resolvable:$true] %s39
      %45 = dma.hbm_to_vmem [thread:$0]  %s38, 256, %s40, [#allocation6], 128, 128, 8
    $region9: #{tpu_custom_call.1} parent=1 // pred_fallthru
      _
    // Predicated region
    $region10: #{tpu_custom_call.1} parent=1 // pred_check
      _
    $region11: #{tpu_custom_call.1} parent=1 // pred_check_branch
      %47 = sbr.rel (0) target = $region13
    $region12: #{tpu_custom_call.1} parent=1 // pred_region
      %48 = dma.done [#allocation3], 256
    $region13: #{tpu_custom_call.1} parent=1 // pred_fallthru
      _
    // Predicated region
    $region14: #{tpu_custom_call.1} parent=1 // pred_check
      _
    $region15: #{tpu_custom_call.1} parent=1 // pred_check_branch
      %50 = sbr.rel (0) target = $region17
    $region16: #{tpu_custom_call.1} parent=1 // pred_region
      %51 = dma.done [#allocation6], 256
    $region17: #{tpu_custom_call.1} parent=1 // pred_fallthru
      _
    %s52 = sadd.s32 0, 0
    %p53 = scmp.lt.s32.totalorder %s52, 0
    %s54 = scalar_select %p53, %s52, 0
    %s55 = smul.u32 2, %s54
    %s56 = sadd.s32 0, 0
    %p57 = scmp.lt.s32.totalorder %s56, 0
    %s58 = scalar_select %p57, %s56, 0
    %s59 = smul.u32 2, %s58
    %p60 = scmp.eq.s32.totalorder 0, 0
    // Predicated region
    $region18: #{tpu_custom_call.1} parent=1 // pred_check
      %p61 = pneg %p60
    $region19: #{tpu_custom_call.1} parent=1 // pred_check_branch
      %63 = sbr.rel (%p61) target = $region21
    $region20: #{tpu_custom_call.1} parent=1 // pred_region
      %64 = vst [vmem:[#allocation7] sm:$0xff] 0.0
    $region21: #{tpu_custom_call.1} parent=1 // pred_fallthru
      _
    %s65 = sadd.s32 0, 0
    %s66 = smul.u32 %s65, 16
    %v67 = vld [vmem:[#allocation2] sm:$0xff]
    %v68 = vld [vmem:[#allocation2 + $0x8] sm:$0xff]
    %v69 = vld [vmem:[#allocation5] sm:$0xff]
    %v70 = vld [vmem:[#allocation5 + $0x8] sm:$0xff]
    %v71 = vmax.f32 %v67, 0.0
    %v72 = vmax.f32 %v68, 0.0
    %v73 = vmul.f32 %v67, %v69
    %v74 = vmul.f32 %v68, %v70
    %v75 = vsub.f32 %v71, %v73
    %v76 = vsub.f32 %v72, %v74
    %v77 = vand.u32 2147483647, %v67
    %v78 = vand.u32 2147483647, %v68
    %v79 = vsub.f32 0.0, %v77
    %v80 = vsub.f32 0.0, %v78
    %v81 = vmul.f32 %v79, 1.442695
    %v82 = vpow.pop %v81
    %v83 = vmul.f32 %v80, 1.442695
    %v84 = vpow.pop %v83
    %v85 = vadd.f32 %v82, 1.0
    %v86 = vlog2.pop %v85
    %v87 = vmul.f32 %v86, 0.6931472
    %v88 = vmul.f32 -0.5, %v82
    %v89 = vadd.f32 %v88, 1.0
    %v90 = vmul.f32 %v89, %v82
    %v91 = vand.u32 2147483647, %v82
    %vm92 = vcmp.lt.f32.partialorder %v91, 0.0004427343
    %v93 = vsel %vm92, %v90, %v87
    %v94 = vadd.f32 %v84, 1.0
    %v95 = vlog2.pop %v94
    %v96 = vmul.f32 %v95, 0.6931472
    %v97 = vmul.f32 -0.5, %v84
    %v98 = vadd.f32 %v97, 1.0
    %v99 = vmul.f32 %v98, %v84
    %v100 = vand.u32 2147483647, %v84
    %vm101 = vcmp.lt.f32.partialorder %v100, 0.0004427343
    %v102 = vsel %vm101, %v99, %v96
    %v103 = vadd.f32 %v75, %v93
    %v104 = vadd.f32 %v76, %v102
    %v105 = vlaneseq
    %v106 = vshrl.u32 %v105, 7
    %v107 = vadd.s32 %v106, 8
    %v108 = vstv %s66
    %v109 = vadd.s32 %v106, %v108
    %v110 = vadd.s32 %v107, %v108
    %v111 = vlaneseq
    %v112 = vand.u32 %v111, 127
    %v113 = vmul.u32 %v109, 128
    %v114 = vmul.u32 %v110, 128
    %v115 = vadd.s32 %v113, %v112
    %v116 = vadd.s32 %v114, %v112
    %vm117 = vcmp.lt.s32.totalorder %v115, 2048
    %vm118 = vcmp.lt.s32.totalorder %v116, 2048
    %v119 = vsel %vm117, %v103, 0.0
    %v120 = vsel %vm118, %v104, 0.0
    %v121 = vld [vmem:[#allocation7] sm:$0x1]
    %v122 = vadd.f32 %v119, %v120
    %v123 = vrot.slane %v122, 4
    %v124 = vadd.f32 %v122, %v123
    %v125 = vrot.slane %v124, 2
    %v126 = vadd.f32 %v124, %v125
    %v127 = vrot.slane %v126, 1
    %v128 = vadd.f32 %v126, %v127
    %v129 = vadd.f32 %v121, %v128
    %130 = vst [vmem:[#allocation7] sm:$0x1] %v129
    // Predicated region
    $region22: #{tpu_custom_call.1} parent=1 // pred_check
      _
    $region23: #{tpu_custom_call.1} parent=1 // pred_check_branch
      %132 = sbr.rel (0) target = $region25
    $region24: #{tpu_custom_call.1} parent=1 // pred_region
      %s134 = ssub.s32 128, 128
      %135 = vsyncadd [#allocation4], %s134
      %s137 = sshll.u32 [#allocation7], 4
      %s138 = int_to_ptr.vmem [resolvable:$true] %s137
      %140 = dma.vmem_to_hbm [thread:$0]  %s138, 128, %s2, [#allocation4]
    $region25: #{tpu_custom_call.1} parent=1 // pred_fallthru
      _
    // Predicated region
    $region26: #{tpu_custom_call.1} parent=1 // pred_check
      _
    $region27: #{tpu_custom_call.1} parent=1 // pred_check_branch
      %142 = sbr.rel (0) target = $region29
    $region28: #{tpu_custom_call.1} parent=1 // pred_region
      %143 = dma.done [#allocation4], 128
    $region29: #{tpu_custom_call.1} parent=1 // pred_fallthru
      _
    %144 = vsyncpa [#allocation3], 1
    %145 = vsyncpa [#allocation6], 1
    %146 = vsyncpa [#allocation4], 1

</llo_original>
